<compile_context>
chip_gen: v7x
topology: tpu7x:2x2x1
jax: 0.10.0
libtpu: 0.0.40
codegen_flags: <defaults>
</compile_context>

<pallas_src>
import functools

import jax
import jax.numpy as jnp
from jax import lax
from jax.experimental import pallas as pl
from jax.experimental.pallas import tpu as pltpu


def _ncc_kernel(scale_ref, q_ref, p_ref, o_ref, acc_ref, qss_ref, pss_ref,
                *, use_bf16):
    """One (i, j, k) grid step: accumulate raw dot + norms; apply scaling at k==last."""
    k = pl.program_id(2)

    @pl.when(k == 0)
    def _init():
        acc_ref[...] = jnp.zeros_like(acc_ref)
        qss_ref[...] = jnp.zeros_like(qss_ref)
        pss_ref[...] = jnp.zeros_like(pss_ref)

    q = q_ref[...]                                            # (tm, tk) f32
    p = p_ref[...]                                            # (tk, tn) f32

    # Partial sums of squares along the shared contraction axis (f32).
    qss_ref[...] += jnp.sum(q * q, axis=-1, keepdims=True)    # (tm, 1)
    pss_ref[...] += jnp.sum(p * p, axis=0, keepdims=True)     # (1, tn)

    # Raw (un-normalized) dot on the MXU, f32 accumulation.
    if use_bf16:
        acc_ref[...] += jnp.dot(q.astype(jnp.bfloat16), p.astype(jnp.bfloat16),
                                preferred_element_type=jnp.float32)
    else:
        acc_ref[...] += jnp.dot(q, p, precision=lax.Precision.HIGHEST,
                                preferred_element_type=jnp.float32)

    @pl.when(k == pl.num_programs(2) - 1)
    def _epilogue():
        eps = jnp.float32(1e-12)
        # 1 / clamp_min(||.||, eps) == rsqrt(clamp_min(sum_sq, eps**2)); rsqrt -> EUP.
        inv_q = lax.rsqrt(jnp.maximum(qss_ref[...], eps * eps))   # (tm, 1)
        inv_p = lax.rsqrt(jnp.maximum(pss_ref[...], eps * eps))   # (1, tn)
        o_ref[...] = (acc_ref[...] * (scale_ref[0] * inv_q) * inv_p).astype(o_ref.dtype)


def _round_up(v, m):
    return ((v + m - 1) // m) * m


def ncc_classifier(x, num_batch, scale, *, use_bf16=True,
                   tm_max=128, tn_max=256, tk_max=512):
    """scores = scale * normalize(x[:B], dim=-1) @ normalize(x[B:], dim=0)."""
    x = x.astype(jnp.float32)
    B = int(num_batch)
    D = x.shape[1]
    assert x.shape[0] - B == D, (
        "x[num_batch:] must be a (D, D) prototype block (classes == features)")
    C = D

    query = x[:B]                        # (B, D)
    proto = x[B:]                        # (D, C)

    # Pad to lane/sublane-dense, tile-aligned shapes.
    B_pad = _round_up(B, 8)
    tm = min(tm_max, B_pad)
    B_pad = _round_up(B_pad, tm)

    C_pad = _round_up(C, 128)
    tn = min(tn_max, C_pad)
    C_pad = _round_up(C_pad, tn)

    D_pad = _round_up(D, 128)
    tk = min(tk_max, D_pad)
    D_pad = _round_up(D_pad, tk)

    q_pad = jnp.pad(query, ((0, B_pad - B), (0, D_pad - D)))
    p_pad = jnp.pad(proto, ((0, D_pad - D), (0, C_pad - C)))
    scale_arr = jnp.full((1,), scale, dtype=jnp.float32)

    grid = (B_pad // tm, C_pad // tn, D_pad // tk)
    kernel = functools.partial(_ncc_kernel, use_bf16=use_bf16)

    out = pl.pallas_call(
        kernel,
        out_shape=jax.ShapeDtypeStruct((B_pad, C_pad), jnp.float32),
        grid_spec=pltpu.PrefetchScalarGridSpec(
            num_scalar_prefetch=1,                       # scale lives in SMEM
            grid=grid,
            in_specs=[
                pl.BlockSpec((tm, tk), lambda i, j, k, s: (i, k)),   # query tile
                pl.BlockSpec((tk, tn), lambda i, j, k, s: (k, j)),   # proto tile
            ],
            out_specs=pl.BlockSpec((tm, tn), lambda i, j, k, s: (i, j)),
            scratch_shapes=[
                pltpu.VMEM((tm, tn), jnp.float32),       # raw-dot accumulator
                pltpu.VMEM((tm, 1), jnp.float32),        # row sum-of-squares of q
                pltpu.VMEM((1, tn), jnp.float32),        # col sum-of-squares of p
            ],
        ),
        compiler_params=pltpu.CompilerParams(
            dimension_semantics=("parallel", "parallel", "arbitrary")),
    )(scale_arr, q_pad, p_pad)

    return out[:B, :C]


def _reference(x, num_batch, scale):
    eps = 1e-12
    query = x[:num_batch]
    proto = x[num_batch:]
    qn = jnp.linalg.norm(query, axis=-1, keepdims=True)
    pn = jnp.linalg.norm(proto, axis=0, keepdims=True)
    q = query / jnp.maximum(qn, eps)
    p = proto / jnp.maximum(pn, eps)
    return scale * jnp.dot(q, p, precision=lax.Precision.HIGHEST)


if __name__ == "__main__":
    key = jax.random.PRNGKey(0)

    # Small shapes implied by the forward: num_batch query rows stacked on top
    # of a (D, D) prototype block.  B=4 queries, feature dim == num_classes = 16.
    num_batch = 4
    feat = 16
    x = jax.random.normal(key, (num_batch + feat, feat), dtype=jnp.float32)
    scale = 10.0                   # nn.Parameter(torch.tensor(10.0)) init value

    ref = _reference(x, num_batch, scale)

    # f32 / precision=HIGHEST path: tight check against the f32 reference.
    scores_f32 = ncc_classifier(x, num_batch, scale, use_bf16=False)
    jax.block_until_ready(scores_f32)
    assert scores_f32.shape == (num_batch, feat)
    assert jnp.allclose(scores_f32, ref, atol=1e-5, rtol=1e-5)

    # Default fast path: bf16 MXU operands, f32 accumulate (looser tolerance).
    scores_bf16 = ncc_classifier(x, num_batch, scale)
    jax.block_until_ready(scores_bf16)
    assert scores_bf16.shape == (num_batch, feat)
    assert jnp.allclose(scores_bf16, ref, atol=1e-1, rtol=5e-2)

    print("KERNEL_OK")
</pallas_src>

<mosaic_0001>
module attributes {stable_mosaic.version = 11 : i64} {
  func.func @_ncc_kernel(%arg0: i32, %arg1: i32, %arg2: i32, %arg3: memref<1xf32, #tpu.memory_space<smem>>, %arg4: memref<8x128xf32, #tpu.memory_space<vmem>>, %arg5: memref<128x128xf32, #tpu.memory_space<vmem>>, %arg6: memref<8x128xf32, #tpu.memory_space<vmem>>, %arg7: memref<8x128xf32, #tpu.memory_space<vmem>>, %arg8: memref<8x1xf32, #tpu.memory_space<vmem>>, %arg9: memref<1x128xf32, #tpu.memory_space<vmem>>) attributes {dimension_semantics = [#tpu.dimension_semantics<parallel>, #tpu.dimension_semantics<parallel>, #tpu.dimension_semantics<arbitrary>], iteration_bounds = array<i64: 1, 1, 1>, scalar_prefetch = 1 : i64, scratch_operands = 3 : i64, tpu.core_type = #tpu.core_type<tc>, window_params = [{transform_indices = @transform_0, window_bounds = array<i64: 8, 128>}, {transform_indices = @transform_1, window_bounds = array<i64: 128, 128>}, {transform_indices = @transform_2, window_bounds = array<i64: 8, 128>}]} {
    %c0_i32 = arith.constant 0 : i32
    %0 = arith.cmpi eq, %arg2, %c0_i32 : i32
    %1 = arith.extui %0 : i1 to i32
    %c0_i32_0 = arith.constant 0 : i32
    %2 = arith.cmpi ne, %1, %c0_i32_0 : i32
    scf.if %2 {
      %cst_20 = arith.constant 0.000000e+00 : f32
      %24 = vector.broadcast %cst_20 : f32 to vector<8x128xf32>
      %c0_21 = arith.constant 0 : index
      %c0_22 = arith.constant 0 : index
      %25 = vector.load %arg7[%c0_21, %c0_22] : memref<8x128xf32, #tpu.memory_space<vmem>>, vector<8x128xf32>
      tpu.vector_store %arg7[%c0_21, %c0_22], %24 {strides = array<i32>} : memref<8x128xf32, #tpu.memory_space<vmem>>, vector<8x128xf32>,
      %cst_23 = arith.constant 0.000000e+00 : f32
      %26 = vector.broadcast %cst_23 : f32 to vector<8x1xf32>
      %c0_24 = arith.constant 0 : index
      %c0_25 = arith.constant 0 : index
      %27 = vector.load %arg8[%c0_24, %c0_25] : memref<8x1xf32, #tpu.memory_space<vmem>>, vector<8x1xf32>
      tpu.vector_store %arg8[%c0_24, %c0_25], %26 {strides = array<i32>} : memref<8x1xf32, #tpu.memory_space<vmem>>, vector<8x1xf32>,
      %cst_26 = arith.constant 0.000000e+00 : f32
      %28 = vector.broadcast %cst_26 : f32 to vector<1x128xf32>
      %c0_27 = arith.constant 0 : index
      %c0_28 = arith.constant 0 : index
      %29 = vector.load %arg9[%c0_27, %c0_28] : memref<1x128xf32, #tpu.memory_space<vmem>>, vector<1x128xf32>
      tpu.vector_store %arg9[%c0_27, %c0_28], %28 {strides = array<i32>} : memref<1x128xf32, #tpu.memory_space<vmem>>, vector<1x128xf32>,
    } else {
    }
    %c0 = arith.constant 0 : index
    %c0_1 = arith.constant 0 : index
    %3 = vector.load %arg4[%c0, %c0_1] : memref<8x128xf32, #tpu.memory_space<vmem>>, vector<8x128xf32>
    %c0_2 = arith.constant 0 : index
    %c0_3 = arith.constant 0 : index
    %4 = vector.load %arg5[%c0_2, %c0_3] : memref<128x128xf32, #tpu.memory_space<vmem>>, vector<128x128xf32>
    %c0_4 = arith.constant 0 : index
    %c0_5 = arith.constant 0 : index
    %5 = vector.load %arg8[%c0_4, %c0_5] : memref<8x1xf32, #tpu.memory_space<vmem>>, vector<8x1xf32>
    %6 = arith.mulf %3, %3 : vector<8x128xf32>
    %cst = arith.constant dense<0.000000e+00> : vector<8xf32>
    %7 = vector.multi_reduction <add>, %6, %cst [1] : vector<8x128xf32> to vector<8xf32>
    %8 = vector.shape_cast %7 : vector<8xf32> to vector<8x1xf32>
    %9 = arith.addf %5, %8 : vector<8x1xf32>
    %c0_6 = arith.constant 0 : index
    %c0_7 = arith.constant 0 : index
    %10 = vector.load %arg8[%c0_6, %c0_7] : memref<8x1xf32, #tpu.memory_space<vmem>>, vector<8x1xf32>
    tpu.vector_store %arg8[%c0_6, %c0_7], %9 {strides = array<i32>} : memref<8x1xf32, #tpu.memory_space<vmem>>, vector<8x1xf32>,
    %c0_8 = arith.constant 0 : index
    %c0_9 = arith.constant 0 : index
    %11 = vector.load %arg9[%c0_8, %c0_9] : memref<1x128xf32, #tpu.memory_space<vmem>>, vector<1x128xf32>
    %12 = arith.mulf %4, %4 : vector<128x128xf32>
    %cst_10 = arith.constant dense<0.000000e+00> : vector<128xf32>
    %13 = vector.multi_reduction <add>, %12, %cst_10 [0] : vector<128x128xf32> to vector<128xf32>
    %14 = vector.shape_cast %13 : vector<128xf32> to vector<1x128xf32>
    %15 = arith.addf %11, %14 : vector<1x128xf32>
    %c0_11 = arith.constant 0 : index
    %c0_12 = arith.constant 0 : index
    %16 = vector.load %arg9[%c0_11, %c0_12] : memref<1x128xf32, #tpu.memory_space<vmem>>, vector<1x128xf32>
    tpu.vector_store %arg9[%c0_11, %c0_12], %15 {strides = array<i32>} : memref<1x128xf32, #tpu.memory_space<vmem>>, vector<1x128xf32>,
    %c0_13 = arith.constant 0 : index
    %c0_14 = arith.constant 0 : index
    %17 = vector.load %arg7[%c0_13, %c0_14] : memref<8x128xf32, #tpu.memory_space<vmem>>, vector<8x128xf32>
    %cst_15 = arith.constant dense<0.000000e+00> : vector<8x128xf32>
    %18 = tpu.matmul %3, %4, %cst_15 {dimension_numbers = #tpu.dot_dimension_numbers<[1], [0], [0], [1], [0, 0, 1, 1], [], []>, precision = #tpu.contract_precision<fp32>} : vector<8x128xf32>, vector<128x128xf32>, vector<8x128xf32> -> vector<8x128xf32>
    %19 = arith.addf %17, %18 : vector<8x128xf32>
    %c0_16 = arith.constant 0 : index
    %c0_17 = arith.constant 0 : index
    %20 = vector.load %arg7[%c0_16, %c0_17] : memref<8x128xf32, #tpu.memory_space<vmem>>, vector<8x128xf32>
    tpu.vector_store %arg7[%c0_16, %c0_17], %19 {strides = array<i32>} : memref<8x128xf32, #tpu.memory_space<vmem>>, vector<8x128xf32>,
    %c0_i32_18 = arith.constant 0 : i32
    %21 = arith.cmpi eq, %arg2, %c0_i32_18 : i32
    %22 = arith.extui %21 : i1 to i32
    %c0_i32_19 = arith.constant 0 : i32
    %23 = arith.cmpi ne, %22, %c0_i32_19 : i32
    scf.if %23 {
      %c0_20 = arith.constant 0 : index
      %c0_21 = arith.constant 0 : index
      %24 = vector.load %arg8[%c0_20, %c0_21] : memref<8x1xf32, #tpu.memory_space<vmem>>, vector<8x1xf32>
      %cst_22 = arith.constant 9.99999996E-13 : f32
      %cst_23 = arith.constant 9.99999996E-13 : f32
      %25 = arith.mulf %cst_22, %cst_23 : f32
      %26 = vector.broadcast %25 : f32 to vector<8x1xf32>
      %27 = arith.maximumf %24, %26 : vector<8x1xf32>
      %28 = math.rsqrt %27 : vector<8x1xf32>
      %c0_24 = arith.constant 0 : index
      %c0_25 = arith.constant 0 : index
      %29 = vector.load %arg9[%c0_24, %c0_25] : memref<1x128xf32, #tpu.memory_space<vmem>>, vector<1x128xf32>
      %cst_26 = arith.constant 9.99999996E-13 : f32
      %cst_27 = arith.constant 9.99999996E-13 : f32
      %30 = arith.mulf %cst_26, %cst_27 : f32
      %31 = vector.broadcast %30 : f32 to vector<1x128xf32>
      %32 = arith.maximumf %29, %31 : vector<1x128xf32>
      %33 = math.rsqrt %32 : vector<1x128xf32>
      %c0_28 = arith.constant 0 : index
      %c0_29 = arith.constant 0 : index
      %34 = vector.load %arg7[%c0_28, %c0_29] : memref<8x128xf32, #tpu.memory_space<vmem>>, vector<8x128xf32>
      %c0_30 = arith.constant 0 : index
      %35 = memref.load %arg3[%c0_30] : memref<1xf32, #tpu.memory_space<smem>>
      %36 = vector.broadcast %35 : f32 to vector<8x1xf32>
      %37 = arith.mulf %36, %28 : vector<8x1xf32>
      %38 = vector.broadcast %37 : vector<8x1xf32> to vector<8x128xf32>
      %39 = arith.mulf %34, %38 : vector<8x128xf32>
      %40 = vector.broadcast %33 : vector<1x128xf32> to vector<8x128xf32>
      %41 = arith.mulf %39, %40 : vector<8x128xf32>
      %c0_31 = arith.constant 0 : index
      %c0_32 = arith.constant 0 : index
      %42 = vector.load %arg6[%c0_31, %c0_32] : memref<8x128xf32, #tpu.memory_space<vmem>>, vector<8x128xf32>
      tpu.vector_store %arg6[%c0_31, %c0_32], %41 {strides = array<i32>} : memref<8x128xf32, #tpu.memory_space<vmem>>, vector<8x128xf32>,
    } else {
    }
    return
  }
  func.func @transform_0(%arg0: i32, %arg1: i32, %arg2: i32, %arg3: memref<1xf32, #tpu.memory_space<smem>>) -> (i32, i32) {
    %c0_i32 = arith.constant 0 : i32
    return %arg0, %arg2 : i32, i32
  }
  func.func @transform_1(%arg0: i32, %arg1: i32, %arg2: i32, %arg3: memref<1xf32, #tpu.memory_space<smem>>) -> (i32, i32) {
    %c0_i32 = arith.constant 0 : i32
    return %arg2, %arg1 : i32, i32
  }
  func.func @transform_2(%arg0: i32, %arg1: i32, %arg2: i32, %arg3: memref<1xf32, #tpu.memory_space<smem>>) -> (i32, i32) {
    %c0_i32 = arith.constant 0 : i32
    return %arg0, %arg1 : i32, i32
  }
}

</mosaic_0001>

<llo_original>
// kernel: tpu_custom_call.1
$region0: #{tpu_custom_call.1}
  #allocation0 [shape = 'u32[]', space=smem, size = 0x4, offset = 0x4, fixed_abs, tag = 'smem constant byte address 0x4 - core index']
  #allocation1 [shape = 'u32[144,128]{1,0:T(1,128)}', space=vmem, size = 0x12000, scoped, tag = 'internal scratch']
  #allocation2 [shape = 'f32[8,128]{1,0:T(8,128)}', space=vmem, size = 0x1000, scoped, tag = 'scratch operand']
  #allocation3 [shape = 'f32[8,1]{1,0:T(8,128)}', space=vmem, size = 0x1000, scoped, tag = 'scratch operand']
  #allocation4 [shape = 'f32[1,128]{1,0:T(1,128)}', space=vmem, size = 0x200, scoped, tag = 'scratch operand']
  #allocation5 [shape = 's32[1]{0}', space=sflag, size = 0x4, scoped, tag = 'scoped memory for tpu_custom_call.1']
  #allocation6 [shape = 'f32[1]{0:T(128)S(6)}', space=smem, size = 0x200, scoped, tag = 'prefetched SMEM operand 0']
  %s0 = inlined_call_operand.<no memory space> [shape: f32[1], index: 0, kind: input, shape index: {}]
  %s1 = inlined_call_operand.hbm [shape: f32[8,128], index: 1, kind: input, shape index: {}]
  %s2 = inlined_call_operand.hbm [shape: f32[128,128], index: 2, kind: input, shape index: {}]
  %s3 = inlined_call_operand.hbm [shape: f32[8,128], index: 3, kind: output, shape index: {}]
  %s4 = sld [smem:[#allocation0]]
  $region34: #{tpu_custom_call.1} parent=0
    _
  %s6 = ssub.s32 1, %s4
  %s7 = scalar_select 0, %s6, %s4
  %8 = sst [smem:[#allocation6]] %s0
  $region1: #{tpu_custom_call.1} parent=0
    #allocation7 [shape = 'u8[4096]{0}', space=vmem, size = 0x1000, scoped, tag = 'input window, operand 1, single buffered']
    #allocation8 [shape = 's32[1]{0}', space=sflag, size = 0x4, scoped, tag = 'scoped memory for tpu_custom_call.1']
    #allocation9 [shape = 's32[1]{0}', space=sflag, size = 0x4, scoped, tag = 'scoped memory for tpu_custom_call.1']
    #allocation10 [shape = 'u8[65536]{0}', space=vmem, size = 0x10000, scoped, tag = 'input window, operand 2, single buffered']
    #allocation11 [shape = 's32[1]{0}', space=sflag, size = 0x4, scoped, tag = 'scoped memory for tpu_custom_call.1']
    #allocation12 [shape = 'u8[4096]{0}', space=vmem, size = 0x1000, scoped, tag = 'output window, operand 0, single buffered']
    %9 = vsyncpa [#allocation8], 0
    %10 = vsyncpa [#allocation11], 0
    %11 = vsyncpa [#allocation9], 0
    // Predicated region
    $region2: #{tpu_custom_call.1} parent=1 // pred_check
      _
    $region3: #{tpu_custom_call.1} parent=1 // pred_check_branch
      %13 = sbr.rel (0) target = $region5
    $region4: #{tpu_custom_call.1} parent=1 // pred_region
      %s15 = ssub.s32 128, 128
      %16 = vsyncadd [#allocation8], %s15
      %s18 = sshll.u32 [#allocation7], 4
      %s19 = int_to_ptr.vmem [resolvable:$true] %s18
      %21 = dma.hbm_to_vmem [thread:$0]  %s1, 128, %s19, [#allocation8]
    $region5: #{tpu_custom_call.1} parent=1 // pred_fallthru
      _
    // Predicated region
    $region6: #{tpu_custom_call.1} parent=1 // pred_check
      _
    $region7: #{tpu_custom_call.1} parent=1 // pred_check_branch
      %23 = sbr.rel (0) target = $region9
    $region8: #{tpu_custom_call.1} parent=1 // pred_region
      %s25 = ssub.s32 2048, 2048
      %26 = vsyncadd [#allocation11], %s25
      %s27 = sshll.u32 [#allocation10], 4
      %s28 = int_to_ptr.vmem [resolvable:$true] %s27
      %33 = dma.hbm_to_vmem [thread:$0]  %s2, 2048, %s28, [#allocation11], 128, 128, 8
    $region9: #{tpu_custom_call.1} parent=1 // pred_fallthru
      _
    // Predicated region
    $region10: #{tpu_custom_call.1} parent=1 // pred_check
      _
    $region11: #{tpu_custom_call.1} parent=1 // pred_check_branch
      %35 = sbr.rel (0) target = $region13
    $region12: #{tpu_custom_call.1} parent=1 // pred_region
      %36 = dma.done [#allocation8], 128
    $region13: #{tpu_custom_call.1} parent=1 // pred_fallthru
      _
    // Predicated region
    $region14: #{tpu_custom_call.1} parent=1 // pred_check
      _
    $region15: #{tpu_custom_call.1} parent=1 // pred_check_branch
      %38 = sbr.rel (0) target = $region17
    $region16: #{tpu_custom_call.1} parent=1 // pred_region
      %39 = dma.done [#allocation11], 2048
    $region17: #{tpu_custom_call.1} parent=1 // pred_fallthru
      _
    %p40 = scmp.eq.s32.totalorder 0, 0
    // Predicated region
    $region18: #{tpu_custom_call.1} parent=1 // pred_check
      %p41 = pneg %p40
    $region19: #{tpu_custom_call.1} parent=1 // pred_check_branch
      %43 = sbr.rel (%p41) target = $region21
    $region20: #{tpu_custom_call.1} parent=1 // pred_region
      %44 = vst [vmem:[#allocation2] sm:$0xff] 0.0
      %vm45 = vcmask 7168
      %46 = vst.msk [vmem:[#allocation3] sm:$0xff] %vm45, 0.0
      %47 = vst [vmem:[#allocation4] sm:$0x1] 0.0
    $region21: #{tpu_custom_call.1} parent=1 // pred_fallthru
      _
    %v48 = vld [vmem:[#allocation7] sm:$0xff]
    %v49 = vld [vmem:[#allocation10] sm:$0xff]
    %v50 = vld [vmem:[#allocation10 + $0x8] sm:$0xff]
    %v51 = vld [vmem:[#allocation10 + $0x10] sm:$0xff]
    %v52 = vld [vmem:[#allocation10 + $0x18] sm:$0xff]
    %v53 = vld [vmem:[#allocation10 + $0x20] sm:$0xff]
    %v54 = vld [vmem:[#allocation10 + $0x28] sm:$0xff]
    %v55 = vld [vmem:[#allocation10 + $0x30] sm:$0xff]
    %v56 = vld [vmem:[#allocation10 + $0x38] sm:$0xff]
    %v57 = vld [vmem:[#allocation10 + $0x40] sm:$0xff]
    %v58 = vld [vmem:[#allocation10 + $0x48] sm:$0xff]
    %v59 = vld [vmem:[#allocation10 + $0x50] sm:$0xff]
    %v60 = vld [vmem:[#allocation10 + $0x58] sm:$0xff]
    %v61 = vld [vmem:[#allocation10 + $0x60] sm:$0xff]
    %v62 = vld [vmem:[#allocation10 + $0x68] sm:$0xff]
    %v63 = vld [vmem:[#allocation10 + $0x70] sm:$0xff]
    %v64 = vld [vmem:[#allocation10 + $0x78] sm:$0xff]
    %v65 = vld [vmem:[#allocation3] sm:$0xff]
    %v66 = vmul.f32 %v48, %v48
    %67 = vadd.xlane.f32.xlu0 %v66
    %v68 = vpop.xlane.xlu0 %67
    %v69 = vadd.f32 %v65, %v68
    %vm70 = vcmask 7168
    %71 = vst.msk [vmem:[#allocation3] sm:$0xff] %vm70, %v69
    %v72 = vld [vmem:[#allocation4] sm:$0x1]
    %v73 = vmul.f32 %v49, %v49
    %v74 = vmul.f32 %v50, %v50
    %v75 = vmul.f32 %v51, %v51
    %v76 = vmul.f32 %v52, %v52
    %v77 = vmul.f32 %v53, %v53
    %v78 = vmul.f32 %v54, %v54
    %v79 = vmul.f32 %v55, %v55
    %v80 = vmul.f32 %v56, %v56
    %v81 = vmul.f32 %v57, %v57
    %v82 = vmul.f32 %v58, %v58
    %v83 = vmul.f32 %v59, %v59
    %v84 = vmul.f32 %v60, %v60
    %v85 = vmul.f32 %v61, %v61
    %v86 = vmul.f32 %v62, %v62
    %v87 = vmul.f32 %v63, %v63
    %v88 = vmul.f32 %v64, %v64
    %v89 = vadd.f32 %v73, %v74
    %v90 = vadd.f32 %v89, %v75
    %v91 = vadd.f32 %v90, %v76
    %v92 = vadd.f32 %v91, %v77
    %v93 = vadd.f32 %v92, %v78
    %v94 = vadd.f32 %v93, %v79
    %v95 = vadd.f32 %v94, %v80
    %v96 = vadd.f32 %v95, %v81
    %v97 = vadd.f32 %v96, %v82
    %v98 = vadd.f32 %v97, %v83
    %v99 = vadd.f32 %v98, %v84
    %v100 = vadd.f32 %v99, %v85
    %v101 = vadd.f32 %v100, %v86
    %v102 = vadd.f32 %v101, %v87
    %v103 = vadd.f32 %v102, %v88
    %v104 = vrot.slane %v103, 4
    %v105 = vadd.f32 %v103, %v104
    %v106 = vrot.slane %v105, 2
    %v107 = vadd.f32 %v105, %v106
    %v108 = vrot.slane %v107, 1
    %v109 = vadd.f32 %v107, %v108
    %v110 = vadd.f32 %v72, %v109
    %111 = vst [vmem:[#allocation4] sm:$0x1] %v110
    %v112 = vld [vmem:[#allocation2] sm:$0xff]
    %113 = vmatprep.subr.mxu0 0.0
    %v114 = vand.u32 %v49, 4294901760
    %115 = vmatpush1.msra.mxu0 %v114
    %116 = vmatprep.subr.mxu0 0.0
    %v117 = vand.u32 %v50, 4294901760
    %118 = vmatpush1.msra.mxu0 %v117
    %119 = vmatprep.subr.mxu0 0.0
    %v120 = vand.u32 %v51, 4294901760
    %121 = vmatpush1.msra.mxu0 %v120
    %122 = vmatprep.subr.mxu0 0.0
    %v123 = vand.u32 %v52, 4294901760
    %124 = vmatpush1.msra.mxu0 %v123
    %125 = vmatprep.subr.mxu0 0.0
    %v126 = vand.u32 %v53, 4294901760
    %127 = vmatpush1.msra.mxu0 %v126
    %128 = vmatprep.subr.mxu0 0.0
    %v129 = vand.u32 %v54, 4294901760
    %130 = vmatpush1.msra.mxu0 %v129
    %131 = vmatprep.subr.mxu0 0.0
    %v132 = vand.u32 %v55, 4294901760
    %133 = vmatpush1.msra.mxu0 %v132
    %134 = vmatprep.subr.mxu0 0.0
    %v135 = vand.u32 %v56, 4294901760
    %136 = vmatpush1.msra.mxu0 %v135
    %137 = vmatprep.subr.mxu0 0.0
    %v138 = vand.u32 %v57, 4294901760
    %139 = vmatpush1.msra.mxu0 %v138
    %140 = vmatprep.subr.mxu0 0.0
    %v141 = vand.u32 %v58, 4294901760
    %142 = vmatpush1.msra.mxu0 %v141
    %143 = vmatprep.subr.mxu0 0.0
    %v144 = vand.u32 %v59, 4294901760
    %145 = vmatpush1.msra.mxu0 %v144
    %146 = vmatprep.subr.mxu0 0.0
    %v147 = vand.u32 %v60, 4294901760
    %148 = vmatpush1.msra.mxu0 %v147
    %149 = vmatprep.subr.mxu0 0.0
    %v150 = vand.u32 %v61, 4294901760
    %151 = vmatpush1.msra.mxu0 %v150
    %152 = vmatprep.subr.mxu0 0.0
    %v153 = vand.u32 %v62, 4294901760
    %154 = vmatpush1.msra.mxu0 %v153
    %155 = vmatprep.subr.mxu0 0.0
    %v156 = vand.u32 %v63, 4294901760
    %157 = vmatpush1.msra.mxu0 %v156
    %158 = vmatprep.subr.mxu0 0.0
    %v159 = vand.u32 %v64, 4294901760
    %160 = vmatpush1.msra.mxu0 %v159
    %161 = vmatprep.subr.mxu0 0.0
    %162 = vmatpush1.msra.mxu0 0.0
    %163 = vmatprep.subr.mxu0 0.0
    %164 = vmatpush1.msra.mxu0 0.0
    %165 = vmatprep.subr.mxu0 0.0
    %166 = vmatpush1.msra.mxu0 0.0
    %167 = vmatprep.subr.mxu0 0.0
    %168 = vmatpush1.msra.mxu0 0.0
    %169 = vmatprep.subr.mxu0 0.0
    %170 = vmatpush1.msra.mxu0 0.0
    %171 = vmatprep.subr.mxu0 0.0
    %172 = vmatpush1.msra.mxu0 0.0
    %173 = vmatprep.subr.mxu0 0.0
    %174 = vmatpush1.msra.mxu0 0.0
    %175 = vmatprep.subr.mxu0 0.0
    %176 = vmatpush1.msra.mxu0 0.0
    %177 = vmatprep.subr.mxu0 0.0
    %178 = vmatpush1.msra.mxu0 0.0
    %179 = vmatprep.subr.mxu0 0.0
    %180 = vmatpush1.msra.mxu0 0.0
    %181 = vmatprep.subr.mxu0 0.0
    %182 = vmatpush1.msra.mxu0 0.0
    %183 = vmatprep.subr.mxu0 0.0
    %184 = vmatpush1.msra.mxu0 0.0
    %185 = vmatprep.subr.mxu0 0.0
    %186 = vmatpush1.msra.mxu0 0.0
    %187 = vmatprep.subr.mxu0 0.0
    %188 = vmatpush1.msra.mxu0 0.0
    %189 = vmatprep.subr.mxu0 0.0
    %190 = vmatpush1.msra.mxu0 0.0
    %191 = vmatprep.subr.mxu0 0.0
    %192 = vmatpush1.msra.mxu0 0.0
    %193 = vmatprep.mubr.f32.mxu0 0.0
    %v194 = vand.u32 %v48, 4294901760
    %v195 = vsub.f32 %v48, %v194
    %v196 = vand.u32 %v195, 4294901760
    %v197 = vsub.f32 %v195, %v196
    %v198 = vand.u32 %v197, 4294901760
    %199 = vmatmul.mubr.f32.gmra.mrb[0].mxu0 %v198
    %v200 = vpop.f32.mrb[0].mxu0
    %v201 = vadd.f32 0.0, %v200
    %v202 = vpop.f32.mrb[0].mxu0
    %203 = vdwg.mxu0
    %204 = vmatprep.subr.mxu0 0.0
    %v205 = vand.u32 %v49, 4294901760
    %v206 = vsub.f32 %v49, %v205
    %v207 = vand.u32 %v206, 4294901760
    %v208 = vsub.f32 %v206, %v207
    %v209 = vand.u32 %v208, 4294901760
    %210 = vmatpush1.msra.mxu0 %v209
    %211 = vmatprep.subr.mxu0 0.0
    %v212 = vand.u32 %v50, 4294901760
    %v213 = vsub.f32 %v50, %v212
    %v214 = vand.u32 %v213, 4294901760
    %v215 = vsub.f32 %v213, %v214
    %v216 = vand.u32 %v215, 4294901760
    %217 = vmatpush1.msra.mxu0 %v216
    %218 = vmatprep.subr.mxu0 0.0
    %v219 = vand.u32 %v51, 4294901760
    %v220 = vsub.f32 %v51, %v219
    %v221 = vand.u32 %v220, 4294901760
    %v222 = vsub.f32 %v220, %v221
    %v223 = vand.u32 %v222, 4294901760
    %224 = vmatpush1.msra.mxu0 %v223
    %225 = vmatprep.subr.mxu0 0.0
    %v226 = vand.u32 %v52, 4294901760
    %v227 = vsub.f32 %v52, %v226
    %v228 = vand.u32 %v227, 4294901760
    %v229 = vsub.f32 %v227, %v228
    %v230 = vand.u32 %v229, 4294901760
    %231 = vmatpush1.msra.mxu0 %v230
    %232 = vmatprep.subr.mxu0 0.0
    %v233 = vand.u32 %v53, 4294901760
    %v234 = vsub.f32 %v53, %v233
    %v235 = vand.u32 %v234, 4294901760
    %v236 = vsub.f32 %v234, %v235
    %v237 = vand.u32 %v236, 4294901760
    %238 = vmatpush1.msra.mxu0 %v237
    %239 = vmatprep.subr.mxu0 0.0
    %v240 = vand.u32 %v54, 4294901760
    %v241 = vsub.f32 %v54, %v240
    %v242 = vand.u32 %v241, 4294901760
    %v243 = vsub.f32 %v241, %v242
    %v244 = vand.u32 %v243, 4294901760
    %245 = vmatpush1.msra.mxu0 %v244
    %246 = vmatprep.subr.mxu0 0.0
    %v247 = vand.u32 %v55, 4294901760
    %v248 = vsub.f32 %v55, %v247
    %v249 = vand.u32 %v248, 4294901760
    %v250 = vsub.f32 %v248, %v249
    %v251 = vand.u32 %v250, 4294901760
    %252 = vmatpush1.msra.mxu0 %v251
    %253 = vmatprep.subr.mxu0 0.0
    %v254 = vand.u32 %v56, 4294901760
    %v255 = vsub.f32 %v56, %v254
    %v256 = vand.u32 %v255, 4294901760
    %v257 = vsub.f32 %v255, %v256
    %v258 = vand.u32 %v257, 4294901760
    %259 = vmatpush1.msra.mxu0 %v258
    %260 = vmatprep.subr.mxu0 0.0
    %v261 = vand.u32 %v57, 4294901760
    %v262 = vsub.f32 %v57, %v261
    %v263 = vand.u32 %v262, 4294901760
    %v264 = vsub.f32 %v262, %v263
    %v265 = vand.u32 %v264, 4294901760
    %266 = vmatpush1.msra.mxu0 %v265
    %267 = vmatprep.subr.mxu0 0.0
    %v268 = vand.u32 %v58, 4294901760
    %v269 = vsub.f32 %v58, %v268
    %v270 = vand.u32 %v269, 4294901760
    %v271 = vsub.f32 %v269, %v270
    %v272 = vand.u32 %v271, 4294901760
    %273 = vmatpush1.msra.mxu0 %v272
    %274 = vmatprep.subr.mxu0 0.0
    %v275 = vand.u32 %v59, 4294901760
    %v276 = vsub.f32 %v59, %v275
    %v277 = vand.u32 %v276, 4294901760
    %v278 = vsub.f32 %v276, %v277
    %v279 = vand.u32 %v278, 4294901760
    %280 = vmatpush1.msra.mxu0 %v279
    %281 = vmatprep.subr.mxu0 0.0
    %v282 = vand.u32 %v60, 4294901760
    %v283 = vsub.f32 %v60, %v282
    %v284 = vand.u32 %v283, 4294901760
    %v285 = vsub.f32 %v283, %v284
    %v286 = vand.u32 %v285, 4294901760
    %287 = vmatpush1.msra.mxu0 %v286
    %288 = vmatprep.subr.mxu0 0.0
    %v289 = vand.u32 %v61, 4294901760
    %v290 = vsub.f32 %v61, %v289
    %v291 = vand.u32 %v290, 4294901760
    %v292 = vsub.f32 %v290, %v291
    %v293 = vand.u32 %v292, 4294901760
    %294 = vmatpush1.msra.mxu0 %v293
    %295 = vmatprep.subr.mxu0 0.0
    %v296 = vand.u32 %v62, 4294901760
    %v297 = vsub.f32 %v62, %v296
    %v298 = vand.u32 %v297, 4294901760
    %v299 = vsub.f32 %v297, %v298
    %v300 = vand.u32 %v299, 4294901760
    %301 = vmatpush1.msra.mxu0 %v300
    %302 = vmatprep.subr.mxu0 0.0
    %v303 = vand.u32 %v63, 4294901760
    %v304 = vsub.f32 %v63, %v303
    %v305 = vand.u32 %v304, 4294901760
    %v306 = vsub.f32 %v304, %v305
    %v307 = vand.u32 %v306, 4294901760
    %308 = vmatpush1.msra.mxu0 %v307
    %309 = vmatprep.subr.mxu0 0.0
    %v310 = vand.u32 %v64, 4294901760
    %v311 = vsub.f32 %v64, %v310
    %v312 = vand.u32 %v311, 4294901760
    %v313 = vsub.f32 %v311, %v312
    %v314 = vand.u32 %v313, 4294901760
    %315 = vmatpush1.msra.mxu0 %v314
    %316 = vmatprep.subr.mxu0 0.0
    %317 = vmatpush1.msra.mxu0 0.0
    %318 = vmatprep.subr.mxu0 0.0
    %319 = vmatpush1.msra.mxu0 0.0
    %320 = vmatprep.subr.mxu0 0.0
    %321 = vmatpush1.msra.mxu0 0.0
    %322 = vmatprep.subr.mxu0 0.0
    %323 = vmatpush1.msra.mxu0 0.0
    %324 = vmatprep.subr.mxu0 0.0
    %325 = vmatpush1.msra.mxu0 0.0
    %326 = vmatprep.subr.mxu0 0.0
    %327 = vmatpush1.msra.mxu0 0.0
    %328 = vmatprep.subr.mxu0 0.0
    %329 = vmatpush1.msra.mxu0 0.0
    %330 = vmatprep.subr.mxu0 0.0
    %331 = vmatpush1.msra.mxu0 0.0
    %332 = vmatprep.subr.mxu0 0.0
    %333 = vmatpush1.msra.mxu0 0.0
    %334 = vmatprep.subr.mxu0 0.0
    %335 = vmatpush1.msra.mxu0 0.0
    %336 = vmatprep.subr.mxu0 0.0
    %337 = vmatpush1.msra.mxu0 0.0
    %338 = vmatprep.subr.mxu0 0.0
    %339 = vmatpush1.msra.mxu0 0.0
    %340 = vmatprep.subr.mxu0 0.0
    %341 = vmatpush1.msra.mxu0 0.0
    %342 = vmatprep.subr.mxu0 0.0
    %343 = vmatpush1.msra.mxu0 0.0
    %344 = vmatprep.subr.mxu0 0.0
    %345 = vmatpush1.msra.mxu0 0.0
    %346 = vmatprep.subr.mxu0 0.0
    %347 = vmatpush1.msra.mxu0 0.0
    %348 = vmatprep.mubr.f32.mxu0 0.0
    %v349 = vand.u32 %v48, 4294901760
    %350 = vmatmul.mubr.f32.gmra.mrb[0].mxu0 %v349
    %v351 = vpop.f32.mrb[0].mxu0
    %v352 = vadd.f32 %v201, %v351
    %v353 = vpop.f32.mrb[0].mxu0
    %354 = vdwg.mxu0
    %355 = vmatprep.subr.mxu0 0.0
    %v356 = vand.u32 %v49, 4294901760
    %v357 = vsub.f32 %v49, %v356
    %358 = vmatpush1.msra.mxu0 %v357
    %359 = vmatprep.subr.mxu0 0.0
    %v360 = vand.u32 %v50, 4294901760
    %v361 = vsub.f32 %v50, %v360
    %362 = vmatpush1.msra.mxu0 %v361
    %363 = vmatprep.subr.mxu0 0.0
    %v364 = vand.u32 %v51, 4294901760
    %v365 = vsub.f32 %v51, %v364
    %366 = vmatpush1.msra.mxu0 %v365
    %367 = vmatprep.subr.mxu0 0.0
    %v368 = vand.u32 %v52, 4294901760
    %v369 = vsub.f32 %v52, %v368
    %370 = vmatpush1.msra.mxu0 %v369
    %371 = vmatprep.subr.mxu0 0.0
    %v372 = vand.u32 %v53, 4294901760
    %v373 = vsub.f32 %v53, %v372
    %374 = vmatpush1.msra.mxu0 %v373
    %375 = vmatprep.subr.mxu0 0.0
    %v376 = vand.u32 %v54, 4294901760
    %v377 = vsub.f32 %v54, %v376
    %378 = vmatpush1.msra.mxu0 %v377
    %379 = vmatprep.subr.mxu0 0.0
    %v380 = vand.u32 %v55, 4294901760
    %v381 = vsub.f32 %v55, %v380
    %382 = vmatpush1.msra.mxu0 %v381
    %383 = vmatprep.subr.mxu0 0.0
    %v384 = vand.u32 %v56, 4294901760
    %v385 = vsub.f32 %v56, %v384
    %386 = vmatpush1.msra.mxu0 %v385
    %387 = vmatprep.subr.mxu0 0.0
    %v388 = vand.u32 %v57, 4294901760
    %v389 = vsub.f32 %v57, %v388
    %390 = vmatpush1.msra.mxu0 %v389
    %391 = vmatprep.subr.mxu0 0.0
    %v392 = vand.u32 %v58, 4294901760
    %v393 = vsub.f32 %v58, %v392
    %394 = vmatpush1.msra.mxu0 %v393
    %395 = vmatprep.subr.mxu0 0.0
    %v396 = vand.u32 %v59, 4294901760
    %v397 = vsub.f32 %v59, %v396
    %398 = vmatpush1.msra.mxu0 %v397
    %399 = vmatprep.subr.mxu0 0.0
    %v400 = vand.u32 %v60, 4294901760
    %v401 = vsub.f32 %v60, %v400
    %402 = vmatpush1.msra.mxu0 %v401
    %403 = vmatprep.subr.mxu0 0.0
    %v404 = vand.u32 %v61, 4294901760
    %v405 = vsub.f32 %v61, %v404
    %406 = vmatpush1.msra.mxu0 %v405
    %407 = vmatprep.subr.mxu0 0.0
    %v408 = vand.u32 %v62, 4294901760
    %v409 = vsub.f32 %v62, %v408
    %410 = vmatpush1.msra.mxu0 %v409
    %411 = vmatprep.subr.mxu0 0.0
    %v412 = vand.u32 %v63, 4294901760
    %v413 = vsub.f32 %v63, %v412
    %414 = vmatpush1.msra.mxu0 %v413
    %415 = vmatprep.subr.mxu0 0.0
    %v416 = vand.u32 %v64, 4294901760
    %v417 = vsub.f32 %v64, %v416
    %418 = vmatpush1.msra.mxu0 %v417
    %419 = vmatprep.subr.mxu0 0.0
    %420 = vmatpush1.msra.mxu0 0.0
    %421 = vmatprep.subr.mxu0 0.0
    %422 = vmatpush1.msra.mxu0 0.0
    %423 = vmatprep.subr.mxu0 0.0
    %424 = vmatpush1.msra.mxu0 0.0
    %425 = vmatprep.subr.mxu0 0.0
    %426 = vmatpush1.msra.mxu0 0.0
    %427 = vmatprep.subr.mxu0 0.0
    %428 = vmatpush1.msra.mxu0 0.0
    %429 = vmatprep.subr.mxu0 0.0
    %430 = vmatpush1.msra.mxu0 0.0
    %431 = vmatprep.subr.mxu0 0.0
    %432 = vmatpush1.msra.mxu0 0.0
    %433 = vmatprep.subr.mxu0 0.0
    %434 = vmatpush1.msra.mxu0 0.0
    %435 = vmatprep.subr.mxu0 0.0
    %436 = vmatpush1.msra.mxu0 0.0
    %437 = vmatprep.subr.mxu0 0.0
    %438 = vmatpush1.msra.mxu0 0.0
    %439 = vmatprep.subr.mxu0 0.0
    %440 = vmatpush1.msra.mxu0 0.0
    %441 = vmatprep.subr.mxu0 0.0
    %442 = vmatpush1.msra.mxu0 0.0
    %443 = vmatprep.subr.mxu0 0.0
    %444 = vmatpush1.msra.mxu0 0.0
    %445 = vmatprep.subr.mxu0 0.0
    %446 = vmatpush1.msra.mxu0 0.0
    %447 = vmatprep.subr.mxu0 0.0
    %448 = vmatpush1.msra.mxu0 0.0
    %449 = vmatprep.subr.mxu0 0.0
    %450 = vmatpush1.msra.mxu0 0.0
    %451 = vmatprep.mubr.f32.mxu0 0.0
    %v452 = vand.u32 %v48, 4294901760
    %v453 = vsub.f32 %v48, %v452
    %454 = vmatmul.mubr.f32.gmra.mrb[0].mxu0 %v453
    %v455 = vpop.f32.mrb[0].mxu0
    %v456 = vadd.f32 %v352, %v455
    %v457 = vpop.f32.mrb[0].mxu0
    %458 = vdwg.mxu0
    %459 = vmatprep.subr.mxu0 0.0
    %v460 = vand.u32 %v49, 4294901760
    %461 = vmatpush1.msra.mxu0 %v460
    %462 = vmatprep.subr.mxu0 0.0
    %v463 = vand.u32 %v50, 4294901760
    %464 = vmatpush1.msra.mxu0 %v463
    %465 = vmatprep.subr.mxu0 0.0
    %v466 = vand.u32 %v51, 4294901760
    %467 = vmatpush1.msra.mxu0 %v466
    %468 = vmatprep.subr.mxu0 0.0
    %v469 = vand.u32 %v52, 4294901760
    %470 = vmatpush1.msra.mxu0 %v469
    %471 = vmatprep.subr.mxu0 0.0
    %v472 = vand.u32 %v53, 4294901760
    %473 = vmatpush1.msra.mxu0 %v472
    %474 = vmatprep.subr.mxu0 0.0
    %v475 = vand.u32 %v54, 4294901760
    %476 = vmatpush1.msra.mxu0 %v475
    %477 = vmatprep.subr.mxu0 0.0
    %v478 = vand.u32 %v55, 4294901760
    %479 = vmatpush1.msra.mxu0 %v478
    %480 = vmatprep.subr.mxu0 0.0
    %v481 = vand.u32 %v56, 4294901760
    %482 = vmatpush1.msra.mxu0 %v481
    %483 = vmatprep.subr.mxu0 0.0
    %v484 = vand.u32 %v57, 4294901760
    %485 = vmatpush1.msra.mxu0 %v484
    %486 = vmatprep.subr.mxu0 0.0
    %v487 = vand.u32 %v58, 4294901760
    %488 = vmatpush1.msra.mxu0 %v487
    %489 = vmatprep.subr.mxu0 0.0
    %v490 = vand.u32 %v59, 4294901760
    %491 = vmatpush1.msra.mxu0 %v490
    %492 = vmatprep.subr.mxu0 0.0
    %v493 = vand.u32 %v60, 4294901760
    %494 = vmatpush1.msra.mxu0 %v493
    %495 = vmatprep.subr.mxu0 0.0
    %v496 = vand.u32 %v61, 4294901760
    %497 = vmatpush1.msra.mxu0 %v496
    %498 = vmatprep.subr.mxu0 0.0
    %v499 = vand.u32 %v62, 4294901760
    %500 = vmatpush1.msra.mxu0 %v499
    %501 = vmatprep.subr.mxu0 0.0
    %v502 = vand.u32 %v63, 4294901760
    %503 = vmatpush1.msra.mxu0 %v502
    %504 = vmatprep.subr.mxu0 0.0
    %v505 = vand.u32 %v64, 4294901760
    %506 = vmatpush1.msra.mxu0 %v505
    %507 = vmatprep.subr.mxu0 0.0
    %508 = vmatpush1.msra.mxu0 0.0
    %509 = vmatprep.subr.mxu0 0.0
    %510 = vmatpush1.msra.mxu0 0.0
    %511 = vmatprep.subr.mxu0 0.0
    %512 = vmatpush1.msra.mxu0 0.0
    %513 = vmatprep.subr.mxu0 0.0
    %514 = vmatpush1.msra.mxu0 0.0
    %515 = vmatprep.subr.mxu0 0.0
    %516 = vmatpush1.msra.mxu0 0.0
    %517 = vmatprep.subr.mxu0 0.0
    %518 = vmatpush1.msra.mxu0 0.0
    %519 = vmatprep.subr.mxu0 0.0
    %520 = vmatpush1.msra.mxu0 0.0
    %521 = vmatprep.subr.mxu0 0.0
    %522 = vmatpush1.msra.mxu0 0.0
    %523 = vmatprep.subr.mxu0 0.0
    %524 = vmatpush1.msra.mxu0 0.0
    %525 = vmatprep.subr.mxu0 0.0
    %526 = vmatpush1.msra.mxu0 0.0
    %527 = vmatprep.subr.mxu0 0.0
    %528 = vmatpush1.msra.mxu0 0.0
    %529 = vmatprep.subr.mxu0 0.0
    %530 = vmatpush1.msra.mxu0 0.0
    %531 = vmatprep.subr.mxu0 0.0
    %532 = vmatpush1.msra.mxu0 0.0
    %533 = vmatprep.subr.mxu0 0.0
    %534 = vmatpush1.msra.mxu0 0.0
    %535 = vmatprep.subr.mxu0 0.0
    %536 = vmatpush1.msra.mxu0 0.0
    %537 = vmatprep.subr.mxu0 0.0
    %538 = vmatpush1.msra.mxu0 0.0
    %539 = vmatprep.mubr.f32.mxu0 0.0
    %v540 = vand.u32 %v48, 4294901760
    %v541 = vsub.f32 %v48, %v540
    %v542 = vand.u32 %v541, 4294901760
    %543 = vmatmul.mubr.f32.gmra.mrb[0].mxu0 %v542
    %v544 = vpop.f32.mrb[0].mxu0
    %v545 = vadd.f32 %v456, %v544
    %v546 = vpop.f32.mrb[0].mxu0
    %547 = vdwg.mxu0
    %548 = vmatprep.subr.mxu0 0.0
    %v549 = vand.u32 %v49, 4294901760
    %v550 = vsub.f32 %v49, %v549
    %v551 = vand.u32 %v550, 4294901760
    %552 = vmatpush1.msra.mxu0 %v551
    %553 = vmatprep.subr.mxu0 0.0
    %v554 = vand.u32 %v50, 4294901760
    %v555 = vsub.f32 %v50, %v554
    %v556 = vand.u32 %v555, 4294901760
    %557 = vmatpush1.msra.mxu0 %v556
    %558 = vmatprep.subr.mxu0 0.0
    %v559 = vand.u32 %v51, 4294901760
    %v560 = vsub.f32 %v51, %v559
    %v561 = vand.u32 %v560, 4294901760
    %562 = vmatpush1.msra.mxu0 %v561
    %563 = vmatprep.subr.mxu0 0.0
    %v564 = vand.u32 %v52, 4294901760
    %v565 = vsub.f32 %v52, %v564
    %v566 = vand.u32 %v565, 4294901760
    %567 = vmatpush1.msra.mxu0 %v566
    %568 = vmatprep.subr.mxu0 0.0
    %v569 = vand.u32 %v53, 4294901760
    %v570 = vsub.f32 %v53, %v569
    %v571 = vand.u32 %v570, 4294901760
    %572 = vmatpush1.msra.mxu0 %v571
    %573 = vmatprep.subr.mxu0 0.0
    %v574 = vand.u32 %v54, 4294901760
    %v575 = vsub.f32 %v54, %v574
    %v576 = vand.u32 %v575, 4294901760
    %577 = vmatpush1.msra.mxu0 %v576
    %578 = vmatprep.subr.mxu0 0.0
    %v579 = vand.u32 %v55, 4294901760
    %v580 = vsub.f32 %v55, %v579
    %v581 = vand.u32 %v580, 4294901760
    %582 = vmatpush1.msra.mxu0 %v581
    %583 = vmatprep.subr.mxu0 0.0
    %v584 = vand.u32 %v56, 4294901760
    %v585 = vsub.f32 %v56, %v584
    %v586 = vand.u32 %v585, 4294901760
    %587 = vmatpush1.msra.mxu0 %v586
    %588 = vmatprep.subr.mxu0 0.0
    %v589 = vand.u32 %v57, 4294901760
    %v590 = vsub.f32 %v57, %v589
    %v591 = vand.u32 %v590, 4294901760
    %592 = vmatpush1.msra.mxu0 %v591
    %593 = vmatprep.subr.mxu0 0.0
    %v594 = vand.u32 %v58, 4294901760
    %v595 = vsub.f32 %v58, %v594
    %v596 = vand.u32 %v595, 4294901760
    %597 = vmatpush1.msra.mxu0 %v596
    %598 = vmatprep.subr.mxu0 0.0
    %v599 = vand.u32 %v59, 4294901760
    %v600 = vsub.f32 %v59, %v599
    %v601 = vand.u32 %v600, 4294901760
    %602 = vmatpush1.msra.mxu0 %v601
    %603 = vmatprep.subr.mxu0 0.0
    %v604 = vand.u32 %v60, 4294901760
    %v605 = vsub.f32 %v60, %v604
    %v606 = vand.u32 %v605, 4294901760
    %607 = vmatpush1.msra.mxu0 %v606
    %608 = vmatprep.subr.mxu0 0.0
    %v609 = vand.u32 %v61, 4294901760
    %v610 = vsub.f32 %v61, %v609
    %v611 = vand.u32 %v610, 4294901760
    %612 = vmatpush1.msra.mxu0 %v611
    %613 = vmatprep.subr.mxu0 0.0
    %v614 = vand.u32 %v62, 4294901760
    %v615 = vsub.f32 %v62, %v614
    %v616 = vand.u32 %v615, 4294901760
    %617 = vmatpush1.msra.mxu0 %v616
    %618 = vmatprep.subr.mxu0 0.0
    %v619 = vand.u32 %v63, 4294901760
    %v620 = vsub.f32 %v63, %v619
    %v621 = vand.u32 %v620, 4294901760
    %622 = vmatpush1.msra.mxu0 %v621
    %623 = vmatprep.subr.mxu0 0.0
    %v624 = vand.u32 %v64, 4294901760
    %v625 = vsub.f32 %v64, %v624
    %v626 = vand.u32 %v625, 4294901760
    %627 = vmatpush1.msra.mxu0 %v626
    %628 = vmatprep.subr.mxu0 0.0
    %629 = vmatpush1.msra.mxu0 0.0
    %630 = vmatprep.subr.mxu0 0.0
    %631 = vmatpush1.msra.mxu0 0.0
    %632 = vmatprep.subr.mxu0 0.0
    %633 = vmatpush1.msra.mxu0 0.0
    %634 = vmatprep.subr.mxu0 0.0
    %635 = vmatpush1.msra.mxu0 0.0
    %636 = vmatprep.subr.mxu0 0.0
    %637 = vmatpush1.msra.mxu0 0.0
    %638 = vmatprep.subr.mxu0 0.0
    %639 = vmatpush1.msra.mxu0 0.0
    %640 = vmatprep.subr.mxu0 0.0
    %641 = vmatpush1.msra.mxu0 0.0
    %642 = vmatprep.subr.mxu0 0.0
    %643 = vmatpush1.msra.mxu0 0.0
    %644 = vmatprep.subr.mxu0 0.0
    %645 = vmatpush1.msra.mxu0 0.0
    %646 = vmatprep.subr.mxu0 0.0
    %647 = vmatpush1.msra.mxu0 0.0
    %648 = vmatprep.subr.mxu0 0.0
    %649 = vmatpush1.msra.mxu0 0.0
    %650 = vmatprep.subr.mxu0 0.0
    %651 = vmatpush1.msra.mxu0 0.0
    %652 = vmatprep.subr.mxu0 0.0
    %653 = vmatpush1.msra.mxu0 0.0
    %654 = vmatprep.subr.mxu0 0.0
    %655 = vmatpush1.msra.mxu0 0.0
    %656 = vmatprep.subr.mxu0 0.0
    %657 = vmatpush1.msra.mxu0 0.0
    %658 = vmatprep.subr.mxu0 0.0
    %659 = vmatpush1.msra.mxu0 0.0
    %660 = vmatprep.mubr.f32.mxu0 0.0
    %v661 = vand.u32 %v48, 4294901760
    %662 = vmatmul.mubr.f32.gmra.mrb[0].mxu0 %v661
    %v663 = vpop.f32.mrb[0].mxu0
    %v664 = vadd.f32 %v545, %v663
    %v665 = vpop.f32.mrb[0].mxu0
    %666 = vdwg.mxu0
    %667 = vmatprep.subr.mxu0 0.0
    %v668 = vand.u32 %v49, 4294901760
    %669 = vmatpush1.msra.mxu0 %v668
    %670 = vmatprep.subr.mxu0 0.0
    %v671 = vand.u32 %v50, 4294901760
    %672 = vmatpush1.msra.mxu0 %v671
    %673 = vmatprep.subr.mxu0 0.0
    %v674 = vand.u32 %v51, 4294901760
    %675 = vmatpush1.msra.mxu0 %v674
    %676 = vmatprep.subr.mxu0 0.0
    %v677 = vand.u32 %v52, 4294901760
    %678 = vmatpush1.msra.mxu0 %v677
    %679 = vmatprep.subr.mxu0 0.0
    %v680 = vand.u32 %v53, 4294901760
    %681 = vmatpush1.msra.mxu0 %v680
    %682 = vmatprep.subr.mxu0 0.0
    %v683 = vand.u32 %v54, 4294901760
    %684 = vmatpush1.msra.mxu0 %v683
    %685 = vmatprep.subr.mxu0 0.0
    %v686 = vand.u32 %v55, 4294901760
    %687 = vmatpush1.msra.mxu0 %v686
    %688 = vmatprep.subr.mxu0 0.0
    %v689 = vand.u32 %v56, 4294901760
    %690 = vmatpush1.msra.mxu0 %v689
    %691 = vmatprep.subr.mxu0 0.0
    %v692 = vand.u32 %v57, 4294901760
    %693 = vmatpush1.msra.mxu0 %v692
    %694 = vmatprep.subr.mxu0 0.0
    %v695 = vand.u32 %v58, 4294901760
    %696 = vmatpush1.msra.mxu0 %v695
    %697 = vmatprep.subr.mxu0 0.0
    %v698 = vand.u32 %v59, 4294901760
    %699 = vmatpush1.msra.mxu0 %v698
    %700 = vmatprep.subr.mxu0 0.0
    %v701 = vand.u32 %v60, 4294901760
    %702 = vmatpush1.msra.mxu0 %v701
    %703 = vmatprep.subr.mxu0 0.0
    %v704 = vand.u32 %v61, 4294901760
    %705 = vmatpush1.msra.mxu0 %v704
    %706 = vmatprep.subr.mxu0 0.0
    %v707 = vand.u32 %v62, 4294901760
    %708 = vmatpush1.msra.mxu0 %v707
    %709 = vmatprep.subr.mxu0 0.0
    %v710 = vand.u32 %v63, 4294901760
    %711 = vmatpush1.msra.mxu0 %v710
    %712 = vmatprep.subr.mxu0 0.0
    %v713 = vand.u32 %v64, 4294901760
    %714 = vmatpush1.msra.mxu0 %v713
    %715 = vmatprep.subr.mxu0 0.0
    %716 = vmatpush1.msra.mxu0 0.0
    %717 = vmatprep.subr.mxu0 0.0
    %718 = vmatpush1.msra.mxu0 0.0
    %719 = vmatprep.subr.mxu0 0.0
    %720 = vmatpush1.msra.mxu0 0.0
    %721 = vmatprep.subr.mxu0 0.0
    %722 = vmatpush1.msra.mxu0 0.0
    %723 = vmatprep.subr.mxu0 0.0
    %724 = vmatpush1.msra.mxu0 0.0
    %725 = vmatprep.subr.mxu0 0.0
    %726 = vmatpush1.msra.mxu0 0.0
    %727 = vmatprep.subr.mxu0 0.0
    %728 = vmatpush1.msra.mxu0 0.0
    %729 = vmatprep.subr.mxu0 0.0
    %730 = vmatpush1.msra.mxu0 0.0
    %731 = vmatprep.subr.mxu0 0.0
    %732 = vmatpush1.msra.mxu0 0.0
    %733 = vmatprep.subr.mxu0 0.0
    %734 = vmatpush1.msra.mxu0 0.0
    %735 = vmatprep.subr.mxu0 0.0
    %736 = vmatpush1.msra.mxu0 0.0
    %737 = vmatprep.subr.mxu0 0.0
    %738 = vmatpush1.msra.mxu0 0.0
    %739 = vmatprep.subr.mxu0 0.0
    %740 = vmatpush1.msra.mxu0 0.0
    %741 = vmatprep.subr.mxu0 0.0
    %742 = vmatpush1.msra.mxu0 0.0
    %743 = vmatprep.subr.mxu0 0.0
    %744 = vmatpush1.msra.mxu0 0.0
    %745 = vmatprep.subr.mxu0 0.0
    %746 = vmatpush1.msra.mxu0 0.0
    %747 = vmatprep.mubr.f32.mxu0 0.0
    %v748 = vand.u32 %v48, 4294901760
    %749 = vmatmul.mubr.f32.gmra.mrb[0].mxu0 %v748
    %v750 = vpop.f32.mrb[0].mxu0
    %v751 = vadd.f32 %v664, %v750
    %v752 = vpop.f32.mrb[0].mxu0
    %753 = vdwg.mxu0
    %v754 = vadd.f32 %v112, %v751
    %755 = vst [vmem:[#allocation2] sm:$0xff] %v754
    // Predicated region
    $region22: #{tpu_custom_call.1} parent=1 // pred_check
      %p756 = pneg %p40
    $region23: #{tpu_custom_call.1} parent=1 // pred_check_branch
      %758 = sbr.rel (%p756) target = $region25
    $region24: #{tpu_custom_call.1} parent=1 // pred_region
      %v759 = vld [vmem:[#allocation3] sm:$0xff]
      %v760 = vmax.f32 %v759, 1e-24
      %v761 = vrsqrt.pop %v760
      %v762 = vld [vmem:[#allocation4] sm:$0x1]
      %v763 = vmax.f32 %v762, 1e-24
      %v764 = vrsqrt.pop %v763
      %v765 = vld [vmem:[#allocation2] sm:$0xff]
      %s766 = sld [smem:[#allocation6]]
      %v767 = vstv %s766
      %v768 = vmul.f32 %v767, %v761
      %770 = vset.pattern.permute.xlu0 0
      %771 = vperm.xlu0 %770, %v768
      %v772 = vpop.permute.xlu0 %771
      %v774 = vmul.f32 %v765, %v772
      %v776 = vlaneseq
      %v777 = vshrl.u32 %v776, 7
      %v778 = vsub.s32 0, %v777
      %v779 = vrot.slane %v764, %v778
      %v781 = vmul.f32 %v774, %v779
      %782 = vst [vmem:[#allocation12] sm:$0xff] %v781
    $region25: #{tpu_custom_call.1} parent=1 // pred_fallthru
      _
    // Predicated region
    $region26: #{tpu_custom_call.1} parent=1 // pred_check
      _
    $region27: #{tpu_custom_call.1} parent=1 // pred_check_branch
      %784 = sbr.rel (0) target = $region29
    $region28: #{tpu_custom_call.1} parent=1 // pred_region
      %s786 = ssub.s32 128, 128
      %787 = vsyncadd [#allocation9], %s786
      %s789 = sshll.u32 [#allocation12], 4
      %s790 = int_to_ptr.vmem [resolvable:$true] %s789
      %792 = dma.vmem_to_hbm [thread:$0]  %s790, 128, %s3, [#allocation9]
    $region29: #{tpu_custom_call.1} parent=1 // pred_fallthru
      _
    // Predicated region
    $region30: #{tpu_custom_call.1} parent=1 // pred_check
      _
    $region31: #{tpu_custom_call.1} parent=1 // pred_check_branch
      %794 = sbr.rel (0) target = $region33
    $region32: #{tpu_custom_call.1} parent=1 // pred_region
      %795 = dma.done [#allocation9], 128
    $region33: #{tpu_custom_call.1} parent=1 // pred_fallthru
      _
    %796 = vsyncpa [#allocation8], 1
    %797 = vsyncpa [#allocation11], 1
    %798 = vsyncpa [#allocation9], 1

</llo_original>
